<compile_context>
chip_gen: v7x
topology: tpu7x:2x2x1
jax: 0.10.0
libtpu: 0.0.40
codegen_flags: <defaults>
</compile_context>

<pallas_src>
import functools
import math

import jax
import jax.numpy as jnp
from jax import lax
from jax.experimental import pallas as pl
from jax.experimental.pallas import tpu as pltpu

_LANE = 128
_SUBLANE = 8


def _round_up(x: int, m: int) -> int:
    return ((x + m - 1) // m) * m


def _cdiv(a: int, b: int) -> int:
    return (a + b - 1) // b


def _choose_tile_b(batch: int, tile_b: int) -> int:
    """Batch tile: large (default 1024), multiple of 8, >=2 grid steps if possible."""
    tile_b = max(_SUBLANE, min(tile_b, _round_up(batch, _SUBLANE)))
    tile_b = _round_up(tile_b, _SUBLANE)
    # Keep >= 2 grid steps when the batch allows it so the "parallel" batch
    # axis can shard across both TensorCores on v7x (irrelevant on v5e/v6e).
    if _cdiv(batch, tile_b) < 2 and batch >= 2 * _SUBLANE:
        tile_b = _round_up(_cdiv(batch, 2), _SUBLANE)
    if tile_b > batch:
        # Full-dim block: legal, and avoids OOB reads on tiny batches.
        tile_b = batch
    return tile_b


def _make_mlp_kernel(num_hidden_layers: int, out_feat: int):
    """Kernel for one (tile_b, in_feat) batch tile of the MLP."""
    L = num_hidden_layers

    def kernel(x_ref, w_in_ref, w_hid_ref, slab_ref, o_ref):
        # Input layer: (tile_b, in_feat) @ (in_feat, hid_pad) + b_in, ReLU.
        # K = in_feat is not a multiple of 128; Mosaic pads it internally.
        h = jnp.dot(x_ref[...], w_in_ref[...], preferred_element_type=jnp.float32)
        h = jnp.maximum(h + slab_ref[0:1, :], 0.0)

        if L <= 8:
            # Short stacks: static unroll (w_hid_ref[l] is a static slice).
            for l in range(L):
                h = jnp.dot(h, w_hid_ref[l], preferred_element_type=jnp.float32)
                h = jnp.maximum(h + slab_ref[l + 1:l + 2, :], 0.0)
        else:
            # Deep stacks: fori_loop bounds code size / vreg live ranges.
            def body(l, h):
                w = w_hid_ref[l]                        # dynamic first-axis index
                b = slab_ref[pl.ds(l + 1, 1), :]        # (1, hid_pad)
                return jnp.maximum(
                    jnp.dot(h, w, preferred_element_type=jnp.float32) + b, 0.0)

            h = lax.fori_loop(0, L, body, h)

        if out_feat == 1:
            # Output layer as VPU multiply + lane reduce: avoids a padded MXU
            # matmul and keeps the stored block at (tile_b, 1).
            o = jnp.sum(h * slab_ref[L + 1:L + 2, :], axis=-1, keepdims=True)
            o = o + slab_ref[L + 2:L + 3, 0:1]          # b_out, broadcast (1,1)
        else:
            # General case: W_out^T rows live in the slab; contract lanes.
            w_out_t = slab_ref[L + 1:L + 1 + out_feat, :]    # (out_feat, hid_pad)
            o = lax.dot_general(h, w_out_t, (((1,), (1,)), ((), ())),
                                preferred_element_type=jnp.float32)
            o = o + slab_ref[L + 1 + out_feat:L + 2 + out_feat, 0:out_feat]

        o_ref[...] = o.astype(o_ref.dtype)

    return kernel


def pack_params(params, *, num_hidden_layers: int):
    """Pack + zero-pad parameters ONCE (hoisted out of the forward path).

    params: [(W_in, b_in)] + [(W_h, b_h)]*num_hidden_layers + [(W_out, b_out)],
    W in (in_features, out_features) layout, b of shape (out_features,).

    Returns (w_in_p, w_hid_p, slab):
      w_in_p : (in_feat, hid_pad)            input weights, cols zero-padded
      w_hid_p: (max(L,1), hid_pad, hid_pad)  stacked hidden weights
      slab   : (rows, hid_pad)  row 0 = b_in, rows 1..L = hidden biases,
               rows L+1..L+out_feat = W_out^T, row L+1+out_feat = b_out.
    """
    W_in, b_in = params[0]
    W_out, b_out = params[-1]
    in_feat, hidden = W_in.shape
    out_feat = W_out.shape[1]
    hid_pad = _round_up(hidden, _LANE)
    assert out_feat <= hid_pad, "slab lane width must hold W_out^T / b_out"

    w_in_p = jnp.zeros((in_feat, hid_pad), jnp.float32)
    w_in_p = w_in_p.at[:, :hidden].set(W_in.astype(jnp.float32))

    n_hid = max(num_hidden_layers, 1)          # dummy slab if 0 hidden layers
    w_hid_p = jnp.zeros((n_hid, hid_pad, hid_pad), jnp.float32)
    for l in range(num_hidden_layers):
        W_h, _ = params[1 + l]
        w_hid_p = w_hid_p.at[l, :hidden, :hidden].set(W_h.astype(jnp.float32))

    slab_rows = _round_up(num_hidden_layers + 2 + out_feat, _SUBLANE)
    slab = jnp.zeros((slab_rows, hid_pad), jnp.float32)
    slab = slab.at[0, :hidden].set(b_in.astype(jnp.float32))
    for l in range(num_hidden_layers):
        _, b_h = params[1 + l]
        slab = slab.at[1 + l, :hidden].set(b_h.astype(jnp.float32))
    slab = slab.at[num_hidden_layers + 1:num_hidden_layers + 1 + out_feat,
                   :hidden].set(W_out.T.astype(jnp.float32))
    slab = slab.at[num_hidden_layers + 1 + out_feat,
                   :out_feat].set(b_out.astype(jnp.float32))
    return w_in_p, w_hid_p, slab


def simple_ann_forward(x, w_in_p, w_hid_p, slab, *, num_hidden_layers: int,
                       out_feat: int, tile_b: int = 1024):
    """x: (B, seq, input_size) float32; packed params from pack_params."""
    batch = x.shape[0]
    x_flat = x.reshape(batch, -1).astype(jnp.float32)   # flatten(start_dim=1)
    in_feat, hid_pad = w_in_p.shape
    if x_flat.shape[1] != in_feat:
        raise ValueError(f"flattened features {x_flat.shape[1]} != {in_feat}")
    n_hid = w_hid_p.shape[0]
    slab_rows = slab.shape[0]

    tile_b = _choose_tile_b(batch, tile_b)
    num_tiles = _cdiv(batch, tile_b)

    kernel = _make_mlp_kernel(num_hidden_layers, out_feat)

    flops = 2 * batch * (in_feat * hid_pad
                         + num_hidden_layers * hid_pad * hid_pad
                         + hid_pad * out_feat)
    bytes_accessed = 4 * (x_flat.size + w_in_p.size + w_hid_p.size + slab.size
                          + batch * out_feat)

    # Rough VMEM budget: resident params (double-buffered by the pipeline) +
    # pipelined x/out tiles + activation working set.  Only raise the scoped
    # limit when a large config needs it (v7x: 64 MiB physical, 32 MiB scoped
    # default).  For configs far beyond that, the hidden-weight stack should
    # be tiled over a grid axis instead of kept fully resident.
    vmem_need = (2 * 4 * (w_in_p.size + w_hid_p.size + slab.size)
                 + 2 * 4 * tile_b * (in_feat + out_feat)
                 + 4 * tile_b * hid_pad)
    cp_kwargs = dict(dimension_semantics=("parallel",))
    if vmem_need > 24 * 1024 * 1024:
        cp_kwargs["vmem_limit_bytes"] = int(min(2 * vmem_need, 100 * 1024 * 1024))

    out = pl.pallas_call(
        kernel,
        out_shape=jax.ShapeDtypeStruct((batch, out_feat), jnp.float32),
        grid=(num_tiles,),
        in_specs=[
            # Activations: tiled over the batch; last dim = full feature dim
            # (no wrapper-side padded copy of x).
            pl.BlockSpec((tile_b, in_feat), lambda i: (i, 0)),
            # Parameters: constant index_maps -> DMA'd once, resident in VMEM.
            pl.BlockSpec((in_feat, hid_pad), lambda i: (0, 0)),
            pl.BlockSpec((n_hid, hid_pad, hid_pad), lambda i: (0, 0, 0)),
            pl.BlockSpec((slab_rows, hid_pad), lambda i: (0, 0)),
        ],
        # Narrow (tile_b, out_feat) output block: no 128-lane zero slab and no
        # post-kernel slice copy.
        out_specs=pl.BlockSpec((tile_b, out_feat), lambda i: (i, 0)),
        compiler_params=pltpu.CompilerParams(**cp_kwargs),
        cost_estimate=pl.CostEstimate(flops=flops, transcendentals=0,
                                      bytes_accessed=bytes_accessed),
    )(x_flat, w_in_p, w_hid_p, slab)
    return out


def init_linear(key, fan_in, fan_out):
    """Deterministic PyTorch-style Linear init; W (in, out), b (out,)."""
    kw, kb = jax.random.split(key)
    bound = 1.0 / math.sqrt(fan_in)
    W = jax.random.uniform(kw, (fan_in, fan_out), jnp.float32, -bound, bound)
    b = jax.random.uniform(kb, (fan_out,), jnp.float32, -bound, bound)
    return W, b


def reference_forward(x, params, *, num_hidden_layers: int):
    """Pure-JAX reference matching the PyTorch forward."""
    h = x.reshape(x.shape[0], -1)
    W, b = params[0]
    h = jnp.maximum(h @ W + b, 0.0)
    for l in range(num_hidden_layers):
        W, b = params[1 + l]
        h = jnp.maximum(h @ W + b, 0.0)
    W, b = params[-1]
    return h @ W + b


if __name__ == "__main__":
    # simpleANN hyperparameters (small shapes consistent with the module).
    input_size = 8
    hidden_size = 32
    num_layers = 4                       # -> num_hidden_layers = 2
    sequence_size = 12                   # fixed inside simpleANN
    output_size = 1
    num_hidden_layers = num_layers - 2

    batch = 2

    key = jax.random.PRNGKey(0)
    key, kx = jax.random.split(key)
    x = jax.random.normal(kx, (batch, sequence_size, input_size), jnp.float32)

    # Deterministic parameter initialization (shapes from simpleANN.__init__).
    params = []
    key, k = jax.random.split(key)
    params.append(init_linear(k, sequence_size * input_size, hidden_size))  # input_layer
    for _ in range(num_hidden_layers):                                      # hidden_layers
        key, k = jax.random.split(key)
        params.append(init_linear(k, hidden_size, hidden_size))
    key, k = jax.random.split(key)
    params.append(init_linear(k, hidden_size, output_size))                 # output_layer

    # Pack / pad parameters ONCE (hoisted out of the per-call forward path).
    w_in_p, w_hid_p, slab = pack_params(params, num_hidden_layers=num_hidden_layers)

    fwd = jax.jit(functools.partial(simple_ann_forward,
                                    num_hidden_layers=num_hidden_layers,
                                    out_feat=output_size))
    out = jax.block_until_ready(fwd(x, w_in_p, w_hid_p, slab))

    ref = reference_forward(x, params, num_hidden_layers=num_hidden_layers)
    assert out.shape == (batch, output_size), out.shape
    assert jnp.allclose(out, ref, atol=1e-5, rtol=1e-5), (out, ref)

    print("KERNEL_OK")
</pallas_src>

<mosaic_0001>
module attributes {stable_mosaic.version = 11 : i64} {
  func.func @kernel(%arg0: i32, %arg1: memref<2x96xf32, #tpu.memory_space<vmem>>, %arg2: memref<96x128xf32, #tpu.memory_space<vmem>>, %arg3: memref<2x128x128xf32, #tpu.memory_space<vmem>>, %arg4: memref<8x128xf32, #tpu.memory_space<vmem>>, %arg5: memref<2x1xf32, #tpu.memory_space<vmem>>) attributes {dimension_semantics = [#tpu.dimension_semantics<parallel>], iteration_bounds = array<i64: 1>, scalar_prefetch = 0 : i64, scratch_operands = 0 : i64, tpu.core_type = #tpu.core_type<tc>, window_params = [{transform_indices = @transform_0, window_bounds = array<i64: 2, 96>}, {pipeline_mode = #tpu.pipeline_mode<synchronous>, transform_indices = @transform_1, window_bounds = array<i64: 96, 128>}, {pipeline_mode = #tpu.pipeline_mode<synchronous>, transform_indices = @transform_2, window_bounds = array<i64: 2, 128, 128>}, {pipeline_mode = #tpu.pipeline_mode<synchronous>, transform_indices = @transform_3, window_bounds = array<i64: 8, 128>}, {transform_indices = @transform_4, window_bounds = array<i64: 2, 1>}]} {
    %c0 = arith.constant 0 : index
    %c0_0 = arith.constant 0 : index
    %0 = vector.load %arg1[%c0, %c0_0] : memref<2x96xf32, #tpu.memory_space<vmem>>, vector<2x96xf32>
    %c0_1 = arith.constant 0 : index
    %c0_2 = arith.constant 0 : index
    %1 = vector.load %arg2[%c0_1, %c0_2] : memref<96x128xf32, #tpu.memory_space<vmem>>, vector<96x128xf32>
    %cst = arith.constant dense<0.000000e+00> : vector<2x128xf32>
    %2 = tpu.matmul %0, %1, %cst {dimension_numbers = #tpu.dot_dimension_numbers<[1], [0], [0], [1], [0, 0, 1, 1], [], []>} : vector<2x96xf32>, vector<96x128xf32>, vector<2x128xf32> -> vector<2x128xf32>
    %c0_3 = arith.constant 0 : index
    %c0_4 = arith.constant 0 : index
    %3 = vector.load %arg4[%c0_3, %c0_4] : memref<8x128xf32, #tpu.memory_space<vmem>>, vector<1x128xf32>
    %4 = vector.broadcast %3 : vector<1x128xf32> to vector<2x128xf32>
    %5 = arith.addf %2, %4 : vector<2x128xf32>
    %cst_5 = arith.constant 0.000000e+00 : f32
    %6 = vector.broadcast %cst_5 : f32 to vector<2x128xf32>
    %7 = arith.maximumf %5, %6 : vector<2x128xf32>
    %c0_6 = arith.constant 0 : index
    %c0_7 = arith.constant 0 : index
    %c0_8 = arith.constant 0 : index
    %8 = vector.load %arg3[%c0_6, %c0_7, %c0_8] : memref<2x128x128xf32, #tpu.memory_space<vmem>>, vector<1x128x128xf32>
    %9 = vector.shape_cast %8 : vector<1x128x128xf32> to vector<128x128xf32>
    %cst_9 = arith.constant dense<0.000000e+00> : vector<2x128xf32>
    %10 = tpu.matmul %7, %9, %cst_9 {dimension_numbers = #tpu.dot_dimension_numbers<[1], [0], [0], [1], [0, 0, 1, 1], [], []>} : vector<2x128xf32>, vector<128x128xf32>, vector<2x128xf32> -> vector<2x128xf32>
    %c1 = arith.constant 1 : index
    %c0_10 = arith.constant 0 : index
    %11 = vector.load %arg4[%c1, %c0_10] : memref<8x128xf32, #tpu.memory_space<vmem>>, vector<1x128xf32>
    %12 = vector.broadcast %11 : vector<1x128xf32> to vector<2x128xf32>
    %13 = arith.addf %10, %12 : vector<2x128xf32>
    %cst_11 = arith.constant 0.000000e+00 : f32
    %14 = vector.broadcast %cst_11 : f32 to vector<2x128xf32>
    %15 = arith.maximumf %13, %14 : vector<2x128xf32>
    %c1_12 = arith.constant 1 : index
    %c0_13 = arith.constant 0 : index
    %c0_14 = arith.constant 0 : index
    %16 = vector.load %arg3[%c1_12, %c0_13, %c0_14] : memref<2x128x128xf32, #tpu.memory_space<vmem>>, vector<1x128x128xf32>
    %17 = vector.shape_cast %16 : vector<1x128x128xf32> to vector<128x128xf32>
    %cst_15 = arith.constant dense<0.000000e+00> : vector<2x128xf32>
    %18 = tpu.matmul %15, %17, %cst_15 {dimension_numbers = #tpu.dot_dimension_numbers<[1], [0], [0], [1], [0, 0, 1, 1], [], []>} : vector<2x128xf32>, vector<128x128xf32>, vector<2x128xf32> -> vector<2x128xf32>
    %c2 = arith.constant 2 : index
    %c0_16 = arith.constant 0 : index
    %19 = vector.load %arg4[%c2, %c0_16] : memref<8x128xf32, #tpu.memory_space<vmem>>, vector<1x128xf32>
    %20 = vector.broadcast %19 : vector<1x128xf32> to vector<2x128xf32>
    %21 = arith.addf %18, %20 : vector<2x128xf32>
    %cst_17 = arith.constant 0.000000e+00 : f32
    %22 = vector.broadcast %cst_17 : f32 to vector<2x128xf32>
    %23 = arith.maximumf %21, %22 : vector<2x128xf32>
    %c3 = arith.constant 3 : index
    %c0_18 = arith.constant 0 : index
    %24 = vector.load %arg4[%c3, %c0_18] : memref<8x128xf32, #tpu.memory_space<vmem>>, vector<1x128xf32>
    %25 = vector.broadcast %24 : vector<1x128xf32> to vector<2x128xf32>
    %26 = arith.mulf %23, %25 : vector<2x128xf32>
    %cst_19 = arith.constant dense<0.000000e+00> : vector<2xf32>
    %27 = vector.multi_reduction <add>, %26, %cst_19 [1] : vector<2x128xf32> to vector<2xf32>
    %28 = vector.shape_cast %27 : vector<2xf32> to vector<2x1xf32>
    %c4 = arith.constant 4 : index
    %c0_20 = arith.constant 0 : index
    %29 = vector.load %arg4[%c4, %c0_20] : memref<8x128xf32, #tpu.memory_space<vmem>>, vector<1x1xf32>
    %30 = vector.broadcast %29 : vector<1x1xf32> to vector<2x1xf32>
    %31 = arith.addf %28, %30 : vector<2x1xf32>
    %c0_21 = arith.constant 0 : index
    %c0_22 = arith.constant 0 : index
    %32 = vector.load %arg5[%c0_21, %c0_22] : memref<2x1xf32, #tpu.memory_space<vmem>>, vector<2x1xf32>
    tpu.vector_store %arg5[%c0_21, %c0_22], %31 {strides = array<i32>} : memref<2x1xf32, #tpu.memory_space<vmem>>, vector<2x1xf32>,
    return
  }
  func.func @transform_0(%arg0: i32) -> (i32, i32) {
    %c0_i32 = arith.constant 0 : i32
    %c0_i32_0 = arith.constant 0 : i32
    return %arg0, %c0_i32 : i32, i32
  }
  func.func @transform_1(%arg0: i32) -> (i32, i32) {
    %c0_i32 = arith.constant 0 : i32
    %c0_i32_0 = arith.constant 0 : i32
    %c0_i32_1 = arith.constant 0 : i32
    return %c0_i32, %c0_i32_0 : i32, i32
  }
  func.func @transform_2(%arg0: i32) -> (i32, i32, i32) {
    %c0_i32 = arith.constant 0 : i32
    %c0_i32_0 = arith.constant 0 : i32
    %c0_i32_1 = arith.constant 0 : i32
    %c0_i32_2 = arith.constant 0 : i32
    return %c0_i32, %c0_i32_0, %c0_i32_1 : i32, i32, i32
  }
  func.func @transform_3(%arg0: i32) -> (i32, i32) {
    %c0_i32 = arith.constant 0 : i32
    %c0_i32_0 = arith.constant 0 : i32
    %c0_i32_1 = arith.constant 0 : i32
    return %c0_i32, %c0_i32_0 : i32, i32
  }
  func.func @transform_4(%arg0: i32) -> (i32, i32) {
    %c0_i32 = arith.constant 0 : i32
    %c0_i32_0 = arith.constant 0 : i32
    return %arg0, %c0_i32 : i32, i32
  }
}

</mosaic_0001>

<llo_original>
// kernel: simple_ann_forward.1
$region0: #{simple_ann_forward.1}
  #allocation0 [shape = 'u32[]', space=smem, size = 0x4, offset = 0x4, fixed_abs, tag = 'smem constant byte address 0x4 - core index']
  #allocation1 [shape = 'u32[144,128]{1,0:T(1,128)}', space=vmem, size = 0x12000, scoped, tag = 'internal scratch']
  %s0 = inlined_call_operand.vmem [shape: f32[2,96], index: 0, kind: input, shape index: {}]
  %s1 = inlined_call_operand.hbm [shape: f32[96,128], index: 1, kind: input, shape index: {}]
  %s2 = inlined_call_operand.hbm [shape: f32[2,128,128], index: 2, kind: input, shape index: {}]
  %s3 = inlined_call_operand.vmem [shape: f32[8,128], index: 3, kind: input, shape index: {}]
  %s4 = inlined_call_operand.vmem [shape: f32[2,1], index: 4, kind: output, shape index: {}]
  %s5 = sld [smem:[#allocation0]]
  $region34: #{simple_ann_forward.1} parent=0
    _
  %s7 = ssub.s32 1, %s5
  %s8 = scalar_select 0, %s7, %s5
  $region1: #{simple_ann_forward.1} parent=0
    #allocation2 [shape = 'u8[49152]{0}', space=vmem, size = 0xc000, scoped, tag = 'input window, operand 1, single buffered']
    #allocation3 [shape = 's32[1]{0}', space=sflag, size = 0x4, scoped, tag = 'scoped memory for simple_ann_forward.1']
    #allocation4 [shape = 'u8[131072]{0}', space=vmem, size = 0x20000, scoped, tag = 'input window, operand 2, single buffered']
    #allocation5 [shape = 's32[1]{0}', space=sflag, size = 0x4, scoped, tag = 'scoped memory for simple_ann_forward.1']
    %9 = vsyncpa [#allocation3], 0
    %10 = vsyncpa [#allocation5], 0
    // Predicated region
    $region2: #{simple_ann_forward.1} parent=1 // pred_check
      _
    $region3: #{simple_ann_forward.1} parent=1 // pred_check_branch
      %12 = sbr.rel (0) target = $region5
    $region4: #{simple_ann_forward.1} parent=1 // pred_region
      _
    $region5: #{simple_ann_forward.1} parent=1 // pred_fallthru
      _
    // Predicated region
    $region6: #{simple_ann_forward.1} parent=1 // pred_check
      _
    $region7: #{simple_ann_forward.1} parent=1 // pred_check_branch
      %14 = sbr.rel (0) target = $region9
    $region8: #{simple_ann_forward.1} parent=1 // pred_region
      %s16 = ssub.s32 1536, 1536
      %17 = vsyncadd [#allocation3], %s16
      %s18 = sshll.u32 [#allocation2], 4
      %s19 = int_to_ptr.vmem [resolvable:$true] %s18
      %24 = dma.hbm_to_vmem [thread:$0]  %s1, 1536, %s19, [#allocation3], 128, 128, 8
    $region9: #{simple_ann_forward.1} parent=1 // pred_fallthru
      _
    // Predicated region
    $region10: #{simple_ann_forward.1} parent=1 // pred_check
      _
    $region11: #{simple_ann_forward.1} parent=1 // pred_check_branch
      %26 = sbr.rel (0) target = $region13
    $region12: #{simple_ann_forward.1} parent=1 // pred_region
      %s28 = ssub.s32 4096, 4096
      %29 = vsyncadd [#allocation5], %s28
      %s30 = sshll.u32 [#allocation4], 4
      %s31 = int_to_ptr.vmem [resolvable:$true] %s30
      %36 = dma.hbm_to_vmem [thread:$0]  %s2, 4096, %s31, [#allocation5], 128, 128, 8
    $region13: #{simple_ann_forward.1} parent=1 // pred_fallthru
      _
    // Predicated region
    $region14: #{simple_ann_forward.1} parent=1 // pred_check
      _
    $region15: #{simple_ann_forward.1} parent=1 // pred_check_branch
      %38 = sbr.rel (0) target = $region17
    $region16: #{simple_ann_forward.1} parent=1 // pred_region
      _
    $region17: #{simple_ann_forward.1} parent=1 // pred_fallthru
      _
    // Predicated region
    $region18: #{simple_ann_forward.1} parent=1 // pred_check
      _
    $region19: #{simple_ann_forward.1} parent=1 // pred_check_branch
      %40 = sbr.rel (0) target = $region21
    $region20: #{simple_ann_forward.1} parent=1 // pred_region
      %41 = dma.done [#allocation3], 1536
    $region21: #{simple_ann_forward.1} parent=1 // pred_fallthru
      _
    // Predicated region
    $region22: #{simple_ann_forward.1} parent=1 // pred_check
      _
    $region23: #{simple_ann_forward.1} parent=1 // pred_check_branch
      %43 = sbr.rel (0) target = $region25
    $region24: #{simple_ann_forward.1} parent=1 // pred_region
      %44 = dma.done [#allocation5], 4096
    $region25: #{simple_ann_forward.1} parent=1 // pred_fallthru
      _
    %v45 = vld [vmem:[%s0] sm:$0x3]
    %v46 = vld [vmem:[#allocation2] sm:$0xff]
    %v47 = vld [vmem:[#allocation2 + $0x8] sm:$0xff]
    %v48 = vld [vmem:[#allocation2 + $0x10] sm:$0xff]
    %v49 = vld [vmem:[#allocation2 + $0x18] sm:$0xff]
    %v50 = vld [vmem:[#allocation2 + $0x20] sm:$0xff]
    %v51 = vld [vmem:[#allocation2 + $0x28] sm:$0xff]
    %v52 = vld [vmem:[#allocation2 + $0x30] sm:$0xff]
    %v53 = vld [vmem:[#allocation2 + $0x38] sm:$0xff]
    %v54 = vld [vmem:[#allocation2 + $0x40] sm:$0xff]
    %v55 = vld [vmem:[#allocation2 + $0x48] sm:$0xff]
    %v56 = vld [vmem:[#allocation2 + $0x50] sm:$0xff]
    %v57 = vld [vmem:[#allocation2 + $0x58] sm:$0xff]
    %v58 = vld [vmem:[%s3] sm:$0x1]
    %v59 = vlaneseq
    %v60 = vshrl.u32 %v59, 7
    %v61 = vsub.s32 0, %v60
    %v62 = vrot.slane %v58, %v61
    %vm63 = vcmask 785408
    %v65 = vsel %vm63, %v45, 0
    %67 = vmatprep.subr.mxu0 0.0
    %68 = vmatpush1.msra.mxu0 %v46
    %69 = vmatprep.subr.mxu0 0.0
    %70 = vmatpush1.msra.mxu0 %v47
    %71 = vmatprep.subr.mxu0 0.0
    %72 = vmatpush1.msra.mxu0 %v48
    %73 = vmatprep.subr.mxu0 0.0
    %74 = vmatpush1.msra.mxu0 %v49
    %75 = vmatprep.subr.mxu0 0.0
    %76 = vmatpush1.msra.mxu0 %v50
    %77 = vmatprep.subr.mxu0 0.0
    %78 = vmatpush1.msra.mxu0 %v51
    %79 = vmatprep.subr.mxu0 0.0
    %80 = vmatpush1.msra.mxu0 %v52
    %81 = vmatprep.subr.mxu0 0.0
    %82 = vmatpush1.msra.mxu0 %v53
    %83 = vmatprep.subr.mxu0 0.0
    %84 = vmatpush1.msra.mxu0 %v54
    %85 = vmatprep.subr.mxu0 0.0
    %86 = vmatpush1.msra.mxu0 %v55
    %87 = vmatprep.subr.mxu0 0.0
    %88 = vmatpush1.msra.mxu0 %v56
    %89 = vmatprep.subr.mxu0 0.0
    %90 = vmatpush1.msra.mxu0 %v57
    %91 = vmatprep.subr.mxu0 0.0
    %92 = vmatpush1.msra.mxu0 0.0
    %93 = vmatprep.subr.mxu0 0.0
    %94 = vmatpush1.msra.mxu0 0.0
    %95 = vmatprep.subr.mxu0 0.0
    %96 = vmatpush1.msra.mxu0 0.0
    %97 = vmatprep.subr.mxu0 0.0
    %98 = vmatpush1.msra.mxu0 0.0
    %99 = vmatprep.subr.mxu0 0.0
    %100 = vmatpush1.msra.mxu0 0.0
    %101 = vmatprep.subr.mxu0 0.0
    %102 = vmatpush1.msra.mxu0 0.0
    %103 = vmatprep.subr.mxu0 0.0
    %104 = vmatpush1.msra.mxu0 0.0
    %105 = vmatprep.subr.mxu0 0.0
    %106 = vmatpush1.msra.mxu0 0.0
    %107 = vmatprep.subr.mxu0 0.0
    %108 = vmatpush1.msra.mxu0 0.0
    %109 = vmatprep.subr.mxu0 0.0
    %110 = vmatpush1.msra.mxu0 0.0
    %111 = vmatprep.subr.mxu0 0.0
    %112 = vmatpush1.msra.mxu0 0.0
    %113 = vmatprep.subr.mxu0 0.0
    %114 = vmatpush1.msra.mxu0 0.0
    %115 = vmatprep.subr.mxu0 0.0
    %116 = vmatpush1.msra.mxu0 0.0
    %117 = vmatprep.subr.mxu0 0.0
    %118 = vmatpush1.msra.mxu0 0.0
    %119 = vmatprep.subr.mxu0 0.0
    %120 = vmatpush1.msra.mxu0 0.0
    %121 = vmatprep.subr.mxu0 0.0
    %122 = vmatpush1.msra.mxu0 0.0
    %123 = vmatprep.subr.mxu0 0.0
    %124 = vmatpush1.msra.mxu0 0.0
    %125 = vmatprep.subr.mxu0 0.0
    %126 = vmatpush1.msra.mxu0 0.0
    %127 = vmatprep.subr.mxu0 0.0
    %128 = vmatpush1.msra.mxu0 0.0
    %129 = vmatprep.subr.mxu0 0.0
    %130 = vmatpush1.msra.mxu0 0.0
    %131 = vmatprep.mubr.f32.mxu0 0.0
    %132 = vmatmul.mubr.f32.gmra.mrb[0].mxu0 %v65
    %v133 = vpop.f32.mrb[0].mxu0
    %v134 = vadd.f32 %v62, %v133
    %v135 = vpop.f32.mrb[0].mxu0
    %136 = vdwg.mxu0
    %v137 = vmax.f32 %v134, 0.0
    %v138 = vld [vmem:[#allocation4] sm:$0xff]
    %v139 = vld [vmem:[#allocation4 + $0x8] sm:$0xff]
    %v140 = vld [vmem:[#allocation4 + $0x10] sm:$0xff]
    %v141 = vld [vmem:[#allocation4 + $0x18] sm:$0xff]
    %v142 = vld [vmem:[#allocation4 + $0x20] sm:$0xff]
    %v143 = vld [vmem:[#allocation4 + $0x28] sm:$0xff]
    %v144 = vld [vmem:[#allocation4 + $0x30] sm:$0xff]
    %v145 = vld [vmem:[#allocation4 + $0x38] sm:$0xff]
    %v146 = vld [vmem:[#allocation4 + $0x40] sm:$0xff]
    %v147 = vld [vmem:[#allocation4 + $0x48] sm:$0xff]
    %v148 = vld [vmem:[#allocation4 + $0x50] sm:$0xff]
    %v149 = vld [vmem:[#allocation4 + $0x58] sm:$0xff]
    %v150 = vld [vmem:[#allocation4 + $0x60] sm:$0xff]
    %v151 = vld [vmem:[#allocation4 + $0x68] sm:$0xff]
    %v152 = vld [vmem:[#allocation4 + $0x70] sm:$0xff]
    %v153 = vld [vmem:[#allocation4 + $0x78] sm:$0xff]
    %v154 = vld [vmem:[%s3 + $0x1] sm:$0x1]
    %v155 = vlaneseq
    %v156 = vshrl.u32 %v155, 7
    %v157 = vsub.s32 0, %v156
    %v158 = vrot.slane %v154, %v157
    %159 = vmatprep.subr.mxu0 0.0
    %160 = vmatpush1.msra.mxu0 %v138
    %161 = vmatprep.subr.mxu0 0.0
    %162 = vmatpush1.msra.mxu0 %v139
    %163 = vmatprep.subr.mxu0 0.0
    %164 = vmatpush1.msra.mxu0 %v140
    %165 = vmatprep.subr.mxu0 0.0
    %166 = vmatpush1.msra.mxu0 %v141
    %167 = vmatprep.subr.mxu0 0.0
    %168 = vmatpush1.msra.mxu0 %v142
    %169 = vmatprep.subr.mxu0 0.0
    %170 = vmatpush1.msra.mxu0 %v143
    %171 = vmatprep.subr.mxu0 0.0
    %172 = vmatpush1.msra.mxu0 %v144
    %173 = vmatprep.subr.mxu0 0.0
    %174 = vmatpush1.msra.mxu0 %v145
    %175 = vmatprep.subr.mxu0 0.0
    %176 = vmatpush1.msra.mxu0 %v146
    %177 = vmatprep.subr.mxu0 0.0
    %178 = vmatpush1.msra.mxu0 %v147
    %179 = vmatprep.subr.mxu0 0.0
    %180 = vmatpush1.msra.mxu0 %v148
    %181 = vmatprep.subr.mxu0 0.0
    %182 = vmatpush1.msra.mxu0 %v149
    %183 = vmatprep.subr.mxu0 0.0
    %184 = vmatpush1.msra.mxu0 %v150
    %185 = vmatprep.subr.mxu0 0.0
    %186 = vmatpush1.msra.mxu0 %v151
    %187 = vmatprep.subr.mxu0 0.0
    %188 = vmatpush1.msra.mxu0 %v152
    %189 = vmatprep.subr.mxu0 0.0
    %190 = vmatpush1.msra.mxu0 %v153
    %191 = vmatprep.subr.mxu0 0.0
    %192 = vmatpush1.msra.mxu0 0.0
    %193 = vmatprep.subr.mxu0 0.0
    %194 = vmatpush1.msra.mxu0 0.0
    %195 = vmatprep.subr.mxu0 0.0
    %196 = vmatpush1.msra.mxu0 0.0
    %197 = vmatprep.subr.mxu0 0.0
    %198 = vmatpush1.msra.mxu0 0.0
    %199 = vmatprep.subr.mxu0 0.0
    %200 = vmatpush1.msra.mxu0 0.0
    %201 = vmatprep.subr.mxu0 0.0
    %202 = vmatpush1.msra.mxu0 0.0
    %203 = vmatprep.subr.mxu0 0.0
    %204 = vmatpush1.msra.mxu0 0.0
    %205 = vmatprep.subr.mxu0 0.0
    %206 = vmatpush1.msra.mxu0 0.0
    %207 = vmatprep.subr.mxu0 0.0
    %208 = vmatpush1.msra.mxu0 0.0
    %209 = vmatprep.subr.mxu0 0.0
    %210 = vmatpush1.msra.mxu0 0.0
    %211 = vmatprep.subr.mxu0 0.0
    %212 = vmatpush1.msra.mxu0 0.0
    %213 = vmatprep.subr.mxu0 0.0
    %214 = vmatpush1.msra.mxu0 0.0
    %215 = vmatprep.subr.mxu0 0.0
    %216 = vmatpush1.msra.mxu0 0.0
    %217 = vmatprep.subr.mxu0 0.0
    %218 = vmatpush1.msra.mxu0 0.0
    %219 = vmatprep.subr.mxu0 0.0
    %220 = vmatpush1.msra.mxu0 0.0
    %221 = vmatprep.subr.mxu0 0.0
    %222 = vmatpush1.msra.mxu0 0.0
    %223 = vmatprep.mubr.f32.mxu0 0.0
    %224 = vmatmul.mubr.f32.gmra.mrb[0].mxu0 %v137
    %v225 = vpop.f32.mrb[0].mxu0
    %v226 = vadd.f32 %v158, %v225
    %v227 = vpop.f32.mrb[0].mxu0
    %228 = vdwg.mxu0
    %v229 = vmax.f32 %v226, 0.0
    %s230 = scalar_lea.vmem [#allocation4], 128
    %v231 = vld [vmem:[%s230] sm:$0xff]
    %v232 = vld [vmem:[%s230 + $0x8] sm:$0xff]
    %v233 = vld [vmem:[%s230 + $0x10] sm:$0xff]
    %v234 = vld [vmem:[%s230 + $0x18] sm:$0xff]
    %v235 = vld [vmem:[%s230 + $0x20] sm:$0xff]
    %v236 = vld [vmem:[%s230 + $0x28] sm:$0xff]
    %v237 = vld [vmem:[%s230 + $0x30] sm:$0xff]
    %v238 = vld [vmem:[%s230 + $0x38] sm:$0xff]
    %v239 = vld [vmem:[%s230 + $0x40] sm:$0xff]
    %v240 = vld [vmem:[%s230 + $0x48] sm:$0xff]
    %v241 = vld [vmem:[%s230 + $0x50] sm:$0xff]
    %v242 = vld [vmem:[%s230 + $0x58] sm:$0xff]
    %v243 = vld [vmem:[%s230 + $0x60] sm:$0xff]
    %v244 = vld [vmem:[%s230 + $0x68] sm:$0xff]
    %v245 = vld [vmem:[%s230 + $0x70] sm:$0xff]
    %v246 = vld [vmem:[%s230 + $0x78] sm:$0xff]
    %v247 = vld [vmem:[%s3 + $0x2] sm:$0x1]
    %v248 = vlaneseq
    %v249 = vshrl.u32 %v248, 7
    %v250 = vsub.s32 0, %v249
    %v251 = vrot.slane %v247, %v250
    %252 = vmatprep.subr.mxu0 0.0
    %253 = vmatpush1.msra.mxu0 %v231
    %254 = vmatprep.subr.mxu0 0.0
    %255 = vmatpush1.msra.mxu0 %v232
    %256 = vmatprep.subr.mxu0 0.0
    %257 = vmatpush1.msra.mxu0 %v233
    %258 = vmatprep.subr.mxu0 0.0
    %259 = vmatpush1.msra.mxu0 %v234
    %260 = vmatprep.subr.mxu0 0.0
    %261 = vmatpush1.msra.mxu0 %v235
    %262 = vmatprep.subr.mxu0 0.0
    %263 = vmatpush1.msra.mxu0 %v236
    %264 = vmatprep.subr.mxu0 0.0
    %265 = vmatpush1.msra.mxu0 %v237
    %266 = vmatprep.subr.mxu0 0.0
    %267 = vmatpush1.msra.mxu0 %v238
    %268 = vmatprep.subr.mxu0 0.0
    %269 = vmatpush1.msra.mxu0 %v239
    %270 = vmatprep.subr.mxu0 0.0
    %271 = vmatpush1.msra.mxu0 %v240
    %272 = vmatprep.subr.mxu0 0.0
    %273 = vmatpush1.msra.mxu0 %v241
    %274 = vmatprep.subr.mxu0 0.0
    %275 = vmatpush1.msra.mxu0 %v242
    %276 = vmatprep.subr.mxu0 0.0
    %277 = vmatpush1.msra.mxu0 %v243
    %278 = vmatprep.subr.mxu0 0.0
    %279 = vmatpush1.msra.mxu0 %v244
    %280 = vmatprep.subr.mxu0 0.0
    %281 = vmatpush1.msra.mxu0 %v245
    %282 = vmatprep.subr.mxu0 0.0
    %283 = vmatpush1.msra.mxu0 %v246
    %284 = vmatprep.subr.mxu0 0.0
    %285 = vmatpush1.msra.mxu0 0.0
    %286 = vmatprep.subr.mxu0 0.0
    %287 = vmatpush1.msra.mxu0 0.0
    %288 = vmatprep.subr.mxu0 0.0
    %289 = vmatpush1.msra.mxu0 0.0
    %290 = vmatprep.subr.mxu0 0.0
    %291 = vmatpush1.msra.mxu0 0.0
    %292 = vmatprep.subr.mxu0 0.0
    %293 = vmatpush1.msra.mxu0 0.0
    %294 = vmatprep.subr.mxu0 0.0
    %295 = vmatpush1.msra.mxu0 0.0
    %296 = vmatprep.subr.mxu0 0.0
    %297 = vmatpush1.msra.mxu0 0.0
    %298 = vmatprep.subr.mxu0 0.0
    %299 = vmatpush1.msra.mxu0 0.0
    %300 = vmatprep.subr.mxu0 0.0
    %301 = vmatpush1.msra.mxu0 0.0
    %302 = vmatprep.subr.mxu0 0.0
    %303 = vmatpush1.msra.mxu0 0.0
    %304 = vmatprep.subr.mxu0 0.0
    %305 = vmatpush1.msra.mxu0 0.0
    %306 = vmatprep.subr.mxu0 0.0
    %307 = vmatpush1.msra.mxu0 0.0
    %308 = vmatprep.subr.mxu0 0.0
    %309 = vmatpush1.msra.mxu0 0.0
    %310 = vmatprep.subr.mxu0 0.0
    %311 = vmatpush1.msra.mxu0 0.0
    %312 = vmatprep.subr.mxu0 0.0
    %313 = vmatpush1.msra.mxu0 0.0
    %314 = vmatprep.subr.mxu0 0.0
    %315 = vmatpush1.msra.mxu0 0.0
    %316 = vmatprep.mubr.f32.mxu0 0.0
    %317 = vmatmul.mubr.f32.gmra.mrb[0].mxu0 %v229
    %v318 = vpop.f32.mrb[0].mxu0
    %v319 = vadd.f32 %v251, %v318
    %v320 = vpop.f32.mrb[0].mxu0
    %321 = vdwg.mxu0
    %v322 = vmax.f32 %v319, 0.0
    %v323 = vld [vmem:[%s3 + $0x3] sm:$0x1]
    %v324 = vlaneseq
    %v325 = vshrl.u32 %v324, 7
    %v326 = vsub.s32 0, %v325
    %v327 = vrot.slane %v323, %v326
    %v328 = vmul.f32 %v322, %v327
    %vm329 = vcmask 1041408
    %v330 = vsel %vm329, %v328, 0.0
    %331 = vadd.xlane.f32.xlu0 %v330
    %v332 = vpop.xlane.xlu0 %331
    %v333 = vld [vmem:[%s3 + $0x4] sm:$0x1]
    %v334 = vlaneseq
    %v335 = vshrl.u32 %v334, 7
    %v336 = vsub.s32 0, %v335
    %v337 = vrot.slane %v333, %v336
    %v338 = vadd.f32 %v332, %v337
    %vm339 = vcmask 1024
    %340 = vst.msk [vmem:[%s4] sm:$0x3] %vm339, %v338
    // Predicated region
    $region26: #{simple_ann_forward.1} parent=1 // pred_check
      _
    $region27: #{simple_ann_forward.1} parent=1 // pred_check_branch
      %342 = sbr.rel (0) target = $region29
    $region28: #{simple_ann_forward.1} parent=1 // pred_region
      _
    $region29: #{simple_ann_forward.1} parent=1 // pred_fallthru
      _
    // Predicated region
    $region30: #{simple_ann_forward.1} parent=1 // pred_check
      _
    $region31: #{simple_ann_forward.1} parent=1 // pred_check_branch
      %344 = sbr.rel (0) target = $region33
    $region32: #{simple_ann_forward.1} parent=1 // pred_region
      _
    $region33: #{simple_ann_forward.1} parent=1 // pred_fallthru
      _
    %345 = vsyncpa [#allocation3], 1
    %346 = vsyncpa [#allocation5], 1

</llo_original>
